<compile_context>
chip_gen: v5e
topology: v5e:2x2
jax: 0.10.0
libtpu: 0.0.40
codegen_flags: <defaults>
</compile_context>

<pallas_src>
import jax
import jax.numpy as jnp
from jax.experimental import pallas as pl
from jax.experimental.pallas import tpu as pltpu

_EPS = 1e-6


def _round_up(x, m):
    return ((x + m - 1) // m) * m


def _dice_kernel(x_ref, t_ref, o_ref, inter_acc, sx_acc, st_acc):
    k = pl.program_id(0)

    @pl.when(k == 0)
    def _():
        inter_acc[...] = jnp.zeros_like(inter_acc)
        sx_acc[...] = jnp.zeros_like(sx_acc)
        st_acc[...] = jnp.zeros_like(st_acc)

    # Native-dtype tiles in VMEM; cast to f32 immediately after load
    # (v5e has no bf16 VPU; accumulation is in f32 on all generations).
    x = x_ref[...].astype(jnp.float32)          # (B, TILE_N)
    t = t_ref[...].astype(jnp.float32)          # (B, TILE_N)

    # Per-sample partial reductions along the lane (last) axis.
    inter_acc[...] += jnp.sum(x * t, axis=1, keepdims=True)   # (B, 1)
    sx_acc[...] += jnp.sum(x, axis=1, keepdims=True)          # (B, 1)
    st_acc[...] += jnp.sum(t, axis=1, keepdims=True)          # (B, 1)

    @pl.when(k == pl.num_programs(0) - 1)
    def _():
        cardinality = sx_acc[...] + st_acc[...]
        dice = 2.0 * inter_acc[...] / (cardinality + _EPS)
        o_ref[...] = 1.0 - dice                                # (B, 1)


def dice_loss(inputs, target, *, tile_n=2048):
    """inputs, target: (B, C, H, W) arrays. Returns scalar () f32 dice loss."""
    b = inputs.shape[0]
    n = inputs.size // b

    x = jnp.reshape(inputs, (b, n))
    t = jnp.reshape(target, (b, n))
    # bool masks can't be DMA'd usefully; match the prediction's (narrow) dtype.
    if t.dtype == jnp.bool_:
        t = t.astype(x.dtype if jnp.issubdtype(x.dtype, jnp.floating) else jnp.float32)

    # Lane-dim tile: multiple of 128, capped at tile_n; zero-pad N so the grid
    # divides evenly (zero padding is exact for sums and products).
    tn = min(tile_n, _round_up(n, 128))
    n_pad = _round_up(n, tn)
    if n_pad != n:
        x = jnp.pad(x, ((0, 0), (0, n_pad - n)))
        t = jnp.pad(t, ((0, 0), (0, n_pad - n)))

    per_sample = pl.pallas_call(
        _dice_kernel,
        out_shape=jax.ShapeDtypeStruct((b, 1), jnp.float32),
        grid_spec=pltpu.PrefetchScalarGridSpec(
            num_scalar_prefetch=0,
            grid=(n_pad // tn,),
            in_specs=[
                pl.BlockSpec((b, tn), lambda k: (0, k)),
                pl.BlockSpec((b, tn), lambda k: (0, k)),
            ],
            out_specs=pl.BlockSpec((b, 1), lambda k: (0, 0)),
            scratch_shapes=[
                pltpu.VMEM((b, 1), jnp.float32),   # intersection
                pltpu.VMEM((b, 1), jnp.float32),   # sum(x)
                pltpu.VMEM((b, 1), jnp.float32),   # sum(t)
            ],
        ),
        compiler_params=pltpu.CompilerParams(
            dimension_semantics=("arbitrary",),
        ),
    )(x, t)

    # Batch mean in the wrapper (fuses into the surrounding loss graph).
    return jnp.mean(per_sample)


def dice_loss_reference(inputs, target, eps=_EPS):
    dims = (1, 2, 3)
    inputs = inputs.astype(jnp.float32)
    target = target.astype(jnp.float32)
    intersection = jnp.sum(inputs * target, axis=dims)
    cardinality = jnp.sum(inputs + target, axis=dims)
    dice_score = 2.0 * intersection / (cardinality + eps)
    return jnp.mean(1.0 - dice_score)


if __name__ == "__main__":
    key = jax.random.PRNGKey(0)
    k_in, k_tgt = jax.random.split(key)

    # Shapes implied by the module's use (B, C, H, W) segmentation maps.
    B, C, H, W = 2, 4, 16, 16
    inputs = jax.nn.sigmoid(jax.random.normal(k_in, (B, C, H, W), jnp.float32))
    target = (jax.random.uniform(k_tgt, (B, C, H, W), jnp.float32) > 0.5).astype(
        jnp.float32
    )

    out = jax.block_until_ready(dice_loss(inputs, target))
    ref = dice_loss_reference(inputs, target)
    assert out.shape == () and out.dtype == jnp.float32
    assert jnp.allclose(out, ref, rtol=1e-5, atol=1e-6), (out, ref)

    # Second check: native bf16 inputs and a multi-step grid (N = 16384 > TILE_N).
    k_in2, k_tgt2 = jax.random.split(jax.random.PRNGKey(1))
    B2, C2, H2, W2 = 2, 4, 64, 64
    inputs2 = jax.nn.sigmoid(
        jax.random.normal(k_in2, (B2, C2, H2, W2), jnp.float32)
    ).astype(jnp.bfloat16)
    target2 = (jax.random.uniform(k_tgt2, (B2, C2, H2, W2), jnp.float32) > 0.5).astype(
        jnp.bfloat16
    )
    out2 = jax.block_until_ready(dice_loss(inputs2, target2))
    ref2 = dice_loss_reference(inputs2, target2)
    assert out2.shape == () and out2.dtype == jnp.float32
    assert jnp.allclose(out2, ref2, rtol=1e-4, atol=1e-5), (out2, ref2)

    print("KERNEL_OK")
</pallas_src>

<mosaic_0001>
module attributes {stable_mosaic.version = 11 : i64} {
  func.func @_dice_kernel(%arg0: i32, %arg1: memref<2x1024xf32, #tpu.memory_space<vmem>>, %arg2: memref<2x1024xf32, #tpu.memory_space<vmem>>, %arg3: memref<2x1xf32, #tpu.memory_space<vmem>>, %arg4: memref<2x1xf32, #tpu.memory_space<vmem>>, %arg5: memref<2x1xf32, #tpu.memory_space<vmem>>, %arg6: memref<2x1xf32, #tpu.memory_space<vmem>>) attributes {dimension_semantics = [#tpu.dimension_semantics<arbitrary>], iteration_bounds = array<i64: 1>, scalar_prefetch = 0 : i64, scratch_operands = 3 : i64, tpu.core_type = #tpu.core_type<tc>, window_params = [{transform_indices = @transform_0, window_bounds = array<i64: 2, 1024>}, {transform_indices = @transform_1, window_bounds = array<i64: 2, 1024>}, {pipeline_mode = #tpu.pipeline_mode<synchronous>, transform_indices = @transform_2, window_bounds = array<i64: 2, 1>}]} {
    %c0_i32 = arith.constant 0 : i32
    %0 = arith.cmpi eq, %arg0, %c0_i32 : i32
    %1 = arith.extui %0 : i1 to i32
    %c0_i32_0 = arith.constant 0 : i32
    %2 = arith.cmpi ne, %1, %c0_i32_0 : i32
    scf.if %2 {
      %cst_20 = arith.constant 0.000000e+00 : f32
      %24 = vector.broadcast %cst_20 : f32 to vector<2x1xf32>
      %c0_21 = arith.constant 0 : index
      %c0_22 = arith.constant 0 : index
      %25 = vector.load %arg4[%c0_21, %c0_22] : memref<2x1xf32, #tpu.memory_space<vmem>>, vector<2x1xf32>
      tpu.vector_store %arg4[%c0_21, %c0_22], %24 {strides = array<i32>} : memref<2x1xf32, #tpu.memory_space<vmem>>, vector<2x1xf32>,
      %cst_23 = arith.constant 0.000000e+00 : f32
      %26 = vector.broadcast %cst_23 : f32 to vector<2x1xf32>
      %c0_24 = arith.constant 0 : index
      %c0_25 = arith.constant 0 : index
      %27 = vector.load %arg5[%c0_24, %c0_25] : memref<2x1xf32, #tpu.memory_space<vmem>>, vector<2x1xf32>
      tpu.vector_store %arg5[%c0_24, %c0_25], %26 {strides = array<i32>} : memref<2x1xf32, #tpu.memory_space<vmem>>, vector<2x1xf32>,
      %cst_26 = arith.constant 0.000000e+00 : f32
      %28 = vector.broadcast %cst_26 : f32 to vector<2x1xf32>
      %c0_27 = arith.constant 0 : index
      %c0_28 = arith.constant 0 : index
      %29 = vector.load %arg6[%c0_27, %c0_28] : memref<2x1xf32, #tpu.memory_space<vmem>>, vector<2x1xf32>
      tpu.vector_store %arg6[%c0_27, %c0_28], %28 {strides = array<i32>} : memref<2x1xf32, #tpu.memory_space<vmem>>, vector<2x1xf32>,
    } else {
    }
    %c0 = arith.constant 0 : index
    %c0_1 = arith.constant 0 : index
    %3 = vector.load %arg1[%c0, %c0_1] : memref<2x1024xf32, #tpu.memory_space<vmem>>, vector<2x1024xf32>
    %c0_2 = arith.constant 0 : index
    %c0_3 = arith.constant 0 : index
    %4 = vector.load %arg2[%c0_2, %c0_3] : memref<2x1024xf32, #tpu.memory_space<vmem>>, vector<2x1024xf32>
    %c0_4 = arith.constant 0 : index
    %c0_5 = arith.constant 0 : index
    %5 = vector.load %arg4[%c0_4, %c0_5] : memref<2x1xf32, #tpu.memory_space<vmem>>, vector<2x1xf32>
    %6 = arith.mulf %3, %4 : vector<2x1024xf32>
    %cst = arith.constant dense<0.000000e+00> : vector<2xf32>
    %7 = vector.multi_reduction <add>, %6, %cst [1] : vector<2x1024xf32> to vector<2xf32>
    %8 = vector.shape_cast %7 : vector<2xf32> to vector<2x1xf32>
    %9 = arith.addf %5, %8 : vector<2x1xf32>
    %c0_6 = arith.constant 0 : index
    %c0_7 = arith.constant 0 : index
    %10 = vector.load %arg4[%c0_6, %c0_7] : memref<2x1xf32, #tpu.memory_space<vmem>>, vector<2x1xf32>
    tpu.vector_store %arg4[%c0_6, %c0_7], %9 {strides = array<i32>} : memref<2x1xf32, #tpu.memory_space<vmem>>, vector<2x1xf32>,
    %c0_8 = arith.constant 0 : index
    %c0_9 = arith.constant 0 : index
    %11 = vector.load %arg5[%c0_8, %c0_9] : memref<2x1xf32, #tpu.memory_space<vmem>>, vector<2x1xf32>
    %cst_10 = arith.constant dense<0.000000e+00> : vector<2xf32>
    %12 = vector.multi_reduction <add>, %3, %cst_10 [1] : vector<2x1024xf32> to vector<2xf32>
    %13 = vector.shape_cast %12 : vector<2xf32> to vector<2x1xf32>
    %14 = arith.addf %11, %13 : vector<2x1xf32>
    %c0_11 = arith.constant 0 : index
    %c0_12 = arith.constant 0 : index
    %15 = vector.load %arg5[%c0_11, %c0_12] : memref<2x1xf32, #tpu.memory_space<vmem>>, vector<2x1xf32>
    tpu.vector_store %arg5[%c0_11, %c0_12], %14 {strides = array<i32>} : memref<2x1xf32, #tpu.memory_space<vmem>>, vector<2x1xf32>,
    %c0_13 = arith.constant 0 : index
    %c0_14 = arith.constant 0 : index
    %16 = vector.load %arg6[%c0_13, %c0_14] : memref<2x1xf32, #tpu.memory_space<vmem>>, vector<2x1xf32>
    %cst_15 = arith.constant dense<0.000000e+00> : vector<2xf32>
    %17 = vector.multi_reduction <add>, %4, %cst_15 [1] : vector<2x1024xf32> to vector<2xf32>
    %18 = vector.shape_cast %17 : vector<2xf32> to vector<2x1xf32>
    %19 = arith.addf %16, %18 : vector<2x1xf32>
    %c0_16 = arith.constant 0 : index
    %c0_17 = arith.constant 0 : index
    %20 = vector.load %arg6[%c0_16, %c0_17] : memref<2x1xf32, #tpu.memory_space<vmem>>, vector<2x1xf32>
    tpu.vector_store %arg6[%c0_16, %c0_17], %19 {strides = array<i32>} : memref<2x1xf32, #tpu.memory_space<vmem>>, vector<2x1xf32>,
    %c0_i32_18 = arith.constant 0 : i32
    %21 = arith.cmpi eq, %arg0, %c0_i32_18 : i32
    %22 = arith.extui %21 : i1 to i32
    %c0_i32_19 = arith.constant 0 : i32
    %23 = arith.cmpi ne, %22, %c0_i32_19 : i32
    scf.if %23 {
      %c0_20 = arith.constant 0 : index
      %c0_21 = arith.constant 0 : index
      %24 = vector.load %arg5[%c0_20, %c0_21] : memref<2x1xf32, #tpu.memory_space<vmem>>, vector<2x1xf32>
      %c0_22 = arith.constant 0 : index
      %c0_23 = arith.constant 0 : index
      %25 = vector.load %arg6[%c0_22, %c0_23] : memref<2x1xf32, #tpu.memory_space<vmem>>, vector<2x1xf32>
      %26 = arith.addf %24, %25 : vector<2x1xf32>
      %c0_24 = arith.constant 0 : index
      %c0_25 = arith.constant 0 : index
      %27 = vector.load %arg4[%c0_24, %c0_25] : memref<2x1xf32, #tpu.memory_space<vmem>>, vector<2x1xf32>
      %cst_26 = arith.constant 2.000000e+00 : f32
      %28 = vector.broadcast %cst_26 : f32 to vector<2x1xf32>
      %29 = arith.mulf %28, %27 : vector<2x1xf32>
      %cst_27 = arith.constant 9.99999997E-7 : f32
      %30 = vector.broadcast %cst_27 : f32 to vector<2x1xf32>
      %31 = arith.addf %26, %30 : vector<2x1xf32>
      %32 = arith.divf %29, %31 : vector<2x1xf32>
      %cst_28 = arith.constant 1.000000e+00 : f32
      %33 = vector.broadcast %cst_28 : f32 to vector<2x1xf32>
      %34 = arith.subf %33, %32 : vector<2x1xf32>
      %c0_29 = arith.constant 0 : index
      %c0_30 = arith.constant 0 : index
      %35 = vector.load %arg3[%c0_29, %c0_30] : memref<2x1xf32, #tpu.memory_space<vmem>>, vector<2x1xf32>
      tpu.vector_store %arg3[%c0_29, %c0_30], %34 {strides = array<i32>} : memref<2x1xf32, #tpu.memory_space<vmem>>, vector<2x1xf32>,
    } else {
    }
    return
  }
  func.func @transform_0(%arg0: i32) -> (i32, i32) {
    %c0_i32 = arith.constant 0 : i32
    %c0_i32_0 = arith.constant 0 : i32
    return %c0_i32, %arg0 : i32, i32
  }
  func.func @transform_1(%arg0: i32) -> (i32, i32) {
    %c0_i32 = arith.constant 0 : i32
    %c0_i32_0 = arith.constant 0 : i32
    return %c0_i32, %arg0 : i32, i32
  }
  func.func @transform_2(%arg0: i32) -> (i32, i32) {
    %c0_i32 = arith.constant 0 : i32
    %c0_i32_0 = arith.constant 0 : i32
    %c0_i32_1 = arith.constant 0 : i32
    return %c0_i32, %c0_i32_0 : i32, i32
  }
}

</mosaic_0001>

<llo_original>
// kernel: tpu_custom_call.1
$region0: #{tpu_custom_call.1}
  #allocation0 [shape = 'u32[]', space=smem, size = 0x4, offset = 0x4, fixed_abs, tag = 'smem constant byte address 0x4 - core index']
  #allocation1 [shape = 'u32[72,128]{1,0:T(1,128)}', space=vmem, size = 0x9000, scoped, tag = 'internal scratch']
  #allocation2 [shape = 'f32[2,1]{1,0:T(2,128)}', space=vmem, size = 0x400, scoped, tag = 'scratch operand']
  #allocation3 [shape = 'f32[2,1]{1,0:T(2,128)}', space=vmem, size = 0x400, scoped, tag = 'scratch operand']
  #allocation4 [shape = 'f32[2,1]{1,0:T(2,128)}', space=vmem, size = 0x400, scoped, tag = 'scratch operand']
  %s0 = inlined_call_operand.hbm [shape: f32[2,1024], index: 0, kind: input, shape index: {}]
  %s1 = inlined_call_operand.hbm [shape: f32[2,1024], index: 1, kind: input, shape index: {}]
  %s2 = inlined_call_operand.vmem [shape: f32[2,1], index: 2, kind: output, shape index: {}]
  %s3 = sld [smem:[#allocation0]]
  $region34: #{tpu_custom_call.1} parent=0
    _
  %s5 = ssub.s32 1, %s3
  %s6 = scalar_select 0, %s5, %s3
  $region1: #{tpu_custom_call.1} parent=0
    #allocation5 [shape = 'u8[8192]{0}', space=vmem, size = 0x2000, scoped, tag = 'input window, operand 0, single buffered']
    #allocation6 [shape = 's32[1]{0}', space=sflag, size = 0x4, scoped, tag = 'scoped memory for tpu_custom_call.1']
    #allocation7 [shape = 'u8[8192]{0}', space=vmem, size = 0x2000, scoped, tag = 'input window, operand 1, single buffered']
    #allocation8 [shape = 's32[1]{0}', space=sflag, size = 0x4, scoped, tag = 'scoped memory for tpu_custom_call.1']
    %7 = vsyncpa [#allocation6], 0
    %8 = vsyncpa [#allocation8], 0
    // Predicated region
    $region2: #{tpu_custom_call.1} parent=1 // pred_check
      _
    $region3: #{tpu_custom_call.1} parent=1 // pred_check_branch
      %10 = sbr.rel (0) target = $region5
    $region4: #{tpu_custom_call.1} parent=1 // pred_region
      %12 = vsyncadd [#allocation6], 0
      %s14 = sshll.u32 %s0, 4
      %s15 = int_to_ptr.hbm [resolvable:$true] %s14
      %s16 = sshll.u32 [#allocation5], 4
      %s17 = int_to_ptr.vmem [resolvable:$true] %s16
      %19 = dma.hbm_to_vmem [thread:$0]  %s15, 256, %s17, [#allocation6]
    $region5: #{tpu_custom_call.1} parent=1 // pred_fallthru
      _
    // Predicated region
    $region6: #{tpu_custom_call.1} parent=1 // pred_check
      _
    $region7: #{tpu_custom_call.1} parent=1 // pred_check_branch
      %21 = sbr.rel (0) target = $region9
    $region8: #{tpu_custom_call.1} parent=1 // pred_region
      %23 = vsyncadd [#allocation8], 0
      %s25 = sshll.u32 %s1, 4
      %s26 = int_to_ptr.hbm [resolvable:$true] %s25
      %s27 = sshll.u32 [#allocation7], 4
      %s28 = int_to_ptr.vmem [resolvable:$true] %s27
      %30 = dma.hbm_to_vmem [thread:$0]  %s26, 256, %s28, [#allocation8]
    $region9: #{tpu_custom_call.1} parent=1 // pred_fallthru
      _
    // Predicated region
    $region10: #{tpu_custom_call.1} parent=1 // pred_check
      _
    $region11: #{tpu_custom_call.1} parent=1 // pred_check_branch
      %32 = sbr.rel (0) target = $region13
    $region12: #{tpu_custom_call.1} parent=1 // pred_region
      %34 = dma.done [#allocation6], 256
    $region13: #{tpu_custom_call.1} parent=1 // pred_fallthru
      _
    // Predicated region
    $region14: #{tpu_custom_call.1} parent=1 // pred_check
      _
    $region15: #{tpu_custom_call.1} parent=1 // pred_check_branch
      %36 = sbr.rel (0) target = $region17
    $region16: #{tpu_custom_call.1} parent=1 // pred_region
      %38 = dma.done [#allocation8], 256
    $region17: #{tpu_custom_call.1} parent=1 // pred_fallthru
      _
    %p39 = scmp.eq.s32.totalorder 0, 0
    // Predicated region
    $region18: #{tpu_custom_call.1} parent=1 // pred_check
      %p40 = pneg %p39
    $region19: #{tpu_custom_call.1} parent=1 // pred_check_branch
      %42 = sbr.rel (%p40) target = $region21
    $region20: #{tpu_custom_call.1} parent=1 // pred_region
      %vm43 = vcmask 1024
      %44 = vst.msk [vmem:[#allocation2] sm:$0x3] %vm43, 0.0
      %45 = vst.msk [vmem:[#allocation3] sm:$0x3] %vm43, 0.0
      %46 = vst.msk [vmem:[#allocation4] sm:$0x3] %vm43, 0.0
    $region21: #{tpu_custom_call.1} parent=1 // pred_fallthru
      _
    %v47 = vld [vmem:[#allocation5] sm:$0xff]
    %v48 = vld [vmem:[#allocation5 + $0x8] sm:$0xff]
    %v49 = vld [vmem:[#allocation7] sm:$0xff]
    %v50 = vld [vmem:[#allocation7 + $0x8] sm:$0xff]
    %v51 = vld [vmem:[#allocation2] sm:$0x3]
    %v52 = vmul.f32 %v47, %v49
    %v53 = vmul.f32 %v48, %v50
    %56 = vst [vmem:[#allocation1] ss:$4 sm:$0xff] %v52
    %s57 = scalar_lea.vmem [#allocation1], 32
    %58 = vst [vmem:[%s57] ss:$4 sm:$0xff] %v53
    %v59 = vld.sshfl [vmem:[#allocation1] sm:$0xff pattern:$0x73625140]
    %v60 = vld.sshfl [vmem:[#allocation1 + $0x8] sm:$0xff pattern:$0x73625140]
    %v61 = vld.sshfl [vmem:[#allocation1 + $0x10] sm:$0xff pattern:$0x73625140]
    %v62 = vld.sshfl [vmem:[#allocation1 + $0x18] sm:$0xff pattern:$0x73625140]
    %v63 = vld.sshfl [vmem:[#allocation1 + $0x20] sm:$0xff pattern:$0x73625140]
    %v64 = vld.sshfl [vmem:[#allocation1 + $0x28] sm:$0xff pattern:$0x73625140]
    %v65 = vld.sshfl [vmem:[#allocation1 + $0x30] sm:$0xff pattern:$0x73625140]
    %v66 = vld.sshfl [vmem:[#allocation1 + $0x38] sm:$0xff pattern:$0x73625140]
    %vm75 = vcmask 1041408
    %v76 = vsel %vm75, %v59, 0.0
    %v77 = vsel %vm75, %v60, 0.0
    %v78 = vadd.f32 %v76, %v77
    %v79 = vsel %vm75, %v61, 0.0
    %v80 = vadd.f32 %v78, %v79
    %v81 = vsel %vm75, %v62, 0.0
    %v82 = vadd.f32 %v80, %v81
    %v83 = vsel %vm75, %v63, 0.0
    %v84 = vadd.f32 %v82, %v83
    %v85 = vsel %vm75, %v64, 0.0
    %v86 = vadd.f32 %v84, %v85
    %v87 = vsel %vm75, %v65, 0.0
    %v88 = vadd.f32 %v86, %v87
    %v89 = vsel %vm75, %v66, 0.0
    %v90 = vadd.f32 %v88, %v89
    %91 = vadd.xlane.f32.xlu0 %v90
    %v92 = vpop.xlane.xlu0 %91
    %v93 = vadd.f32 %v51, %v92
    %vm94 = vcmask 1024
    %95 = vst.msk [vmem:[#allocation2] sm:$0x3] %vm94, %v93
    %v96 = vld [vmem:[#allocation3] sm:$0x3]
    %99 = vst [vmem:[#allocation1] ss:$4 sm:$0xff] %v47
    %s100 = scalar_lea.vmem [#allocation1], 32
    %101 = vst [vmem:[%s100] ss:$4 sm:$0xff] %v48
    %v102 = vld.sshfl [vmem:[#allocation1] sm:$0xff pattern:$0x73625140]
    %v103 = vld.sshfl [vmem:[#allocation1 + $0x8] sm:$0xff pattern:$0x73625140]
    %v104 = vld.sshfl [vmem:[#allocation1 + $0x10] sm:$0xff pattern:$0x73625140]
    %v105 = vld.sshfl [vmem:[#allocation1 + $0x18] sm:$0xff pattern:$0x73625140]
    %v106 = vld.sshfl [vmem:[#allocation1 + $0x20] sm:$0xff pattern:$0x73625140]
    %v107 = vld.sshfl [vmem:[#allocation1 + $0x28] sm:$0xff pattern:$0x73625140]
    %v108 = vld.sshfl [vmem:[#allocation1 + $0x30] sm:$0xff pattern:$0x73625140]
    %v109 = vld.sshfl [vmem:[#allocation1 + $0x38] sm:$0xff pattern:$0x73625140]
    %v118 = vsel %vm75, %v102, 0.0
    %v119 = vsel %vm75, %v103, 0.0
    %v120 = vadd.f32 %v118, %v119
    %v121 = vsel %vm75, %v104, 0.0
    %v122 = vadd.f32 %v120, %v121
    %v123 = vsel %vm75, %v105, 0.0
    %v124 = vadd.f32 %v122, %v123
    %v125 = vsel %vm75, %v106, 0.0
    %v126 = vadd.f32 %v124, %v125
    %v127 = vsel %vm75, %v107, 0.0
    %v128 = vadd.f32 %v126, %v127
    %v129 = vsel %vm75, %v108, 0.0
    %v130 = vadd.f32 %v128, %v129
    %v131 = vsel %vm75, %v109, 0.0
    %v132 = vadd.f32 %v130, %v131
    %133 = vadd.xlane.f32.xlu0 %v132
    %v134 = vpop.xlane.xlu0 %133
    %v135 = vadd.f32 %v96, %v134
    %136 = vst.msk [vmem:[#allocation3] sm:$0x3] %vm94, %v135
    %v137 = vld [vmem:[#allocation4] sm:$0x3]
    %140 = vst [vmem:[#allocation1] ss:$4 sm:$0xff] %v49
    %s141 = scalar_lea.vmem [#allocation1], 32
    %142 = vst [vmem:[%s141] ss:$4 sm:$0xff] %v50
    %v143 = vld.sshfl [vmem:[#allocation1] sm:$0xff pattern:$0x73625140]
    %v144 = vld.sshfl [vmem:[#allocation1 + $0x8] sm:$0xff pattern:$0x73625140]
    %v145 = vld.sshfl [vmem:[#allocation1 + $0x10] sm:$0xff pattern:$0x73625140]
    %v146 = vld.sshfl [vmem:[#allocation1 + $0x18] sm:$0xff pattern:$0x73625140]
    %v147 = vld.sshfl [vmem:[#allocation1 + $0x20] sm:$0xff pattern:$0x73625140]
    %v148 = vld.sshfl [vmem:[#allocation1 + $0x28] sm:$0xff pattern:$0x73625140]
    %v149 = vld.sshfl [vmem:[#allocation1 + $0x30] sm:$0xff pattern:$0x73625140]
    %v150 = vld.sshfl [vmem:[#allocation1 + $0x38] sm:$0xff pattern:$0x73625140]
    %v159 = vsel %vm75, %v143, 0.0
    %v160 = vsel %vm75, %v144, 0.0
    %v161 = vadd.f32 %v159, %v160
    %v162 = vsel %vm75, %v145, 0.0
    %v163 = vadd.f32 %v161, %v162
    %v164 = vsel %vm75, %v146, 0.0
    %v165 = vadd.f32 %v163, %v164
    %v166 = vsel %vm75, %v147, 0.0
    %v167 = vadd.f32 %v165, %v166
    %v168 = vsel %vm75, %v148, 0.0
    %v169 = vadd.f32 %v167, %v168
    %v170 = vsel %vm75, %v149, 0.0
    %v171 = vadd.f32 %v169, %v170
    %v172 = vsel %vm75, %v150, 0.0
    %v173 = vadd.f32 %v171, %v172
    %174 = vadd.xlane.f32.xlu0 %v173
    %v175 = vpop.xlane.xlu0 %174
    %v176 = vadd.f32 %v137, %v175
    %177 = vst.msk [vmem:[#allocation4] sm:$0x3] %vm94, %v176
    // Predicated region
    $region22: #{tpu_custom_call.1} parent=1 // pred_check
      %p178 = pneg %p39
    $region23: #{tpu_custom_call.1} parent=1 // pred_check_branch
      %180 = sbr.rel (%p178) target = $region25
    $region24: #{tpu_custom_call.1} parent=1 // pred_region
      %v181 = vld [vmem:[#allocation3] sm:$0x3]
      %v182 = vld [vmem:[#allocation4] sm:$0x3]
      %v183 = vadd.f32 %v181, %v182
      %v184 = vld [vmem:[#allocation2] sm:$0x3]
      %v185 = vmul.f32 %v184, 2.0
      %v186 = vadd.f32 %v183, 1e-06
      %v187 = vrcp.pop %v186
      %v188 = vmul.f32 %v186, %v187
      %v189 = vsub.f32 1.0, %v188
      %v190 = vmul.f32 %v187, %v189
      %v191 = vadd.f32 %v187, %v190
      %vm192 = vweird.f32 %v186
      %vm193 = vweird.f32 %v187
      %vm194 = vmor %vm192, %vm193
      %v195 = vsel %vm194, %v187, %v191
      %v196 = vand.u32 2147483647, %v186
      %vm197 = vcmp.eq.f32.partialorder %v196, 8.507059e+37
      %v198 = vand.u32 %v186, 2147483648
      %v199 = vor.u32 1.1754944e-38, %v198
      %v200 = vsel %vm197, %v199, %v195
      %v201 = vmul.f32 %v185, %v200
      %v202 = vsub.f32 1.0, %v201
      %203 = vst.msk [vmem:[%s2] sm:$0x3] %vm94, %v202
    $region25: #{tpu_custom_call.1} parent=1 // pred_fallthru
      _
    // Predicated region
    $region26: #{tpu_custom_call.1} parent=1 // pred_check
      _
    $region27: #{tpu_custom_call.1} parent=1 // pred_check_branch
      %205 = sbr.rel (0) target = $region29
    $region28: #{tpu_custom_call.1} parent=1 // pred_region
      _
    $region29: #{tpu_custom_call.1} parent=1 // pred_fallthru
      _
    // Predicated region
    $region30: #{tpu_custom_call.1} parent=1 // pred_check
      _
    $region31: #{tpu_custom_call.1} parent=1 // pred_check_branch
      %207 = sbr.rel (0) target = $region33
    $region32: #{tpu_custom_call.1} parent=1 // pred_region
      _
    $region33: #{tpu_custom_call.1} parent=1 // pred_fallthru
      _
    %208 = vsyncpa [#allocation6], 1
    %209 = vsyncpa [#allocation8], 1

</llo_original>
